<compile_context>
chip_gen: v5e
topology: v5e:2x2
jax: 0.10.0
libtpu: 0.0.40
codegen_flags: <defaults>
</compile_context>

<pallas_src>
import functools
import math

import jax
import jax.numpy as jnp
from jax.experimental import pallas as pl
from jax.experimental.pallas import tpu as pltpu


def _round_up(x, m):
    return (x + m - 1) // m * m


def _vmem_capacity_bytes():
    """Physical VMEM of the local TPU, with a conservative (v7x) fallback."""
    try:
        info = pltpu.get_tpu_info()
        cap = getattr(info, "vmem_capacity_bytes", None)
        if cap:
            return int(cap)
    except Exception:
        pass
    return 64 * 1024 * 1024  # v7x-sized: the smallest of v5e/v6e/v7x


def _choose_bt(B, Sp, Hp, Dp, work_budget_bytes):
    """Batch elements per grid step, sized against a VMEM working budget."""
    bf16, f32 = 2, 4
    # Double-buffered pipelined blocks: x in, head-out + probs out.
    io = 2 * (Sp * Hp * bf16 + Sp * Dp * bf16 + Sp * Sp * bf16)
    # In-kernel intermediates: f32 qkv, f32 scores + e, bf16 probs, f32 out.
    interm = (Sp * 3 * Dp * f32 + 2 * Sp * Sp * f32 + Sp * Sp * bf16
              + Sp * Dp * f32)
    per_elem = io + interm
    fixed = 2 * Hp * 3 * Dp * bf16  # resident fused weights (double-buffered)
    bt = max(1, (work_budget_bytes - fixed) // per_elem)
    bt = min(bt, B)
    if B >= 2:
        # Keep the parallel grid length >= 2 so both v7x TensorCores get work.
        bt = min(bt, -(-B // 2))
    return int(bt)


def _attention_head_kernel(x_ref, wqkv_ref, out_ref, probs_ref, *,
                           dp, s_valid, compute_dtype):
    bt, sp, hp = x_ref.shape

    # Fused Q/K/V projection (+bias via the ones column on x / bias row on W):
    # one big lane-dense MXU matmul over the whole (Bt*Sp, Hp) tile, f32 acc.
    x2d = x_ref[...].reshape(bt * sp, hp)
    qkv = jnp.dot(x2d, wqkv_ref[...],
                  preferred_element_type=jnp.float32).reshape(bt, sp, 3 * dp)

    q = qkv[..., 0 * dp:1 * dp].astype(compute_dtype)  # 1/sqrt(D) folded in Wq
    k = qkv[..., 1 * dp:2 * dp].astype(compute_dtype)
    v = qkv[..., 2 * dp:3 * dp].astype(compute_dtype)

    # scores = q @ k^T per batch element; f32 accumulation on the MXU.
    scores = jnp.einsum("bqd,bkd->bqk", q, k,
                        preferred_element_type=jnp.float32)   # (bt, sp, sp)

    if s_valid != sp:  # static: only traced when the sequence was padded
        col = jax.lax.broadcasted_iota(jnp.int32, scores.shape, 2)
        scores = jnp.where(col < s_valid, scores, -1e30)

    # Numerically stable softmax, kept in f32 (v5e-safe; -1e30 mask-safe).
    # TODO(synk): on v6e/v7x the exp could run in bf16 if the EUP saturates.
    m = jnp.max(scores, axis=-1, keepdims=True)
    e = jnp.exp(scores - m)
    denom = jnp.sum(e, axis=-1, keepdims=True)
    # bf16 probs computed ONCE; reused for the PV matmul and the output store.
    probs = (e * pl.reciprocal(denom, approx=True)).astype(compute_dtype)
    # TODO(synk): attention-probs dropout is identity at inference (eval mode).

    out = jnp.einsum("bqk,bkd->bqd", probs, v,
                     preferred_element_type=jnp.float32)      # (bt, sp, dp)

    out_ref[...] = out.astype(out_ref.dtype)
    probs_ref[...] = probs.astype(probs_ref.dtype)


def make_attention_head(wq, wk, wv, bq, bk, bv, *, dtype=jnp.bfloat16):
    """Build a jitted forward for one ViT attention head (eval mode).

    Weight prep (1/sqrt(D) scale folding, Dp padding, QKV fusion, bias-row
    fold, bf16 cast) is done here once, not per call.

    Weights are laid out so y = x @ W + b (i.e. W is (hidden, head_size)).
    """
    Hd, D = wq.shape
    scale = 1.0 / math.sqrt(D)
    Dp = _round_up(D, 128)   # lane-dense head dim (zero-padded columns)
    Hp = Hd + 1              # +1 row for the folded bias (x gets a ones column)

    def pad_w(w):
        return jnp.pad(w, ((0, 0), (0, Dp - D)))

    def pad_b(b):
        return jnp.pad(b, ((0, Dp - D),))

    w_fused = jnp.concatenate([pad_w(wq * scale), pad_w(wk), pad_w(wv)], axis=1)
    b_fused = jnp.concatenate([pad_b(bq * scale), pad_b(bk), pad_b(bv)], axis=0)
    wqkv = jnp.concatenate([w_fused, b_fused[None, :]],
                           axis=0).astype(dtype)               # (Hp, 3*Dp)

    vmem_cap = _vmem_capacity_bytes()
    vmem_limit = int(vmem_cap * 0.85)    # headroom for compiler scratch
    work_budget = int(vmem_cap * 0.55)   # budget used when sizing Bt

    @jax.jit
    def forward(x):
        B, S, Hd_in = x.shape
        assert Hd_in == Hd, "hidden size mismatch"
        Sp = _round_up(S, 128)   # lane-dense scores/probs cols; bf16-packed rows
        Bt = _choose_bt(B, Sp, Hp, Dp, work_budget)
        Bp = _round_up(B, Bt)

        # Single fused pre-pass on x: cast to bf16, append the ones column
        # (bias fold), zero-pad seq->Sp and batch->Bp.  Padded key columns are
        # masked in-kernel; padded rows/batches are sliced off on return.
        x_aug = jnp.concatenate(
            [x.astype(dtype), jnp.ones((B, S, 1), dtype)], axis=-1)
        x_aug = jnp.pad(x_aug, ((0, Bp - B), (0, Sp - S), (0, 0)))

        kernel = functools.partial(_attention_head_kernel, dp=Dp, s_valid=S,
                                   compute_dtype=dtype)

        out_p, probs_p = pl.pallas_call(
            kernel,
            out_shape=(
                jax.ShapeDtypeStruct((Bp, Sp, Dp), dtype),
                jax.ShapeDtypeStruct((Bp, Sp, Sp), dtype),
            ),
            grid=(Bp // Bt,),
            in_specs=[
                pl.BlockSpec((Bt, Sp, Hp), lambda b: (b, 0, 0)),  # x tile
                pl.BlockSpec((Hp, 3 * Dp), lambda b: (0, 0)),     # fused W (resident)
            ],
            out_specs=(
                pl.BlockSpec((Bt, Sp, Dp), lambda b: (b, 0, 0)),  # head output
                pl.BlockSpec((Bt, Sp, Sp), lambda b: (b, 0, 0)),  # attention probs
            ),
            compiler_params=pltpu.CompilerParams(
                dimension_semantics=("parallel",),
                vmem_limit_bytes=vmem_limit,
            ),
        )(x_aug, wqkv)
        # TODO(synk): for S >~ 1-2K the (Sp, Sp) scores/probs block must be
        # KV-tiled (online softmax, "arbitrary" KV grid axis), v7x first; the
        # module API requires returning full (B, S, S) probs so that HBM
        # writeback itself cannot be elided.

        return out_p[:B, :S, :D], probs_p[:B, :S, :S]

    return forward


def _reference(x, wq, wk, wv, bq, bk, bv):
    """Pure-JAX f32 reference mirroring the PyTorch forward (eval mode)."""
    D = wq.shape[1]
    q = x @ wq + bq
    k = x @ wk + bk
    v = x @ wv + bv
    s = jnp.einsum("bqd,bkd->bqk", q, k) / math.sqrt(D)
    p = jax.nn.softmax(s, axis=-1)
    return p @ v, p


if __name__ == "__main__":
    batch, seq, hidden, head_size = 2, 8, 32, 8
    key = jax.random.PRNGKey(0)
    kx, k1, k2, k3, k4, k5, k6 = jax.random.split(key, 7)
    std = 0.02
    x = jax.random.normal(kx, (batch, seq, hidden), jnp.float32)
    wq = std * jax.random.normal(k1, (hidden, head_size), jnp.float32)
    wk = std * jax.random.normal(k2, (hidden, head_size), jnp.float32)
    wv = std * jax.random.normal(k3, (hidden, head_size), jnp.float32)
    bq = std * jax.random.normal(k4, (head_size,), jnp.float32)
    bk = std * jax.random.normal(k5, (head_size,), jnp.float32)
    bv = std * jax.random.normal(k6, (head_size,), jnp.float32)

    head = make_attention_head(wq, wk, wv, bq, bk, bv)
    out, probs = head(x)
    out = jax.block_until_ready(out)
    probs = jax.block_until_ready(probs)

    ref_out, ref_probs = _reference(x, wq, wk, wv, bq, bk, bv)

    assert out.shape == (batch, seq, head_size)
    assert probs.shape == (batch, seq, seq)
    # bf16 MXU inputs + bf16 outputs + approx reciprocal => relaxed tolerance
    # vs the f32 reference.
    assert jnp.allclose(out.astype(jnp.float32), ref_out, atol=1e-2, rtol=1e-2)
    assert jnp.allclose(probs.astype(jnp.float32), ref_probs, atol=1e-2, rtol=1e-2)

    print("KERNEL_OK")
</pallas_src>

<mosaic_0001>
module attributes {stable_mosaic.version = 11 : i64} {
  func.func @_attention_head_kernel(%arg0: i32, %arg1: memref<1x128x33xbf16, #tpu.memory_space<vmem>>, %arg2: memref<33x384xbf16, #tpu.memory_space<vmem>>, %arg3: memref<1x128x128xbf16, #tpu.memory_space<vmem>>, %arg4: memref<1x128x128xbf16, #tpu.memory_space<vmem>>) attributes {dimension_semantics = [#tpu.dimension_semantics<parallel>], iteration_bounds = array<i64: 2>, scalar_prefetch = 0 : i64, scratch_operands = 0 : i64, tpu.core_type = #tpu.core_type<tc>, window_params = [{transform_indices = @transform_0, window_bounds = array<i64: 1, 128, 33>}, {pipeline_mode = #tpu.pipeline_mode<synchronous>, transform_indices = @transform_1, window_bounds = array<i64: 33, 384>}, {transform_indices = @transform_2, window_bounds = array<i64: 1, 128, 128>}, {transform_indices = @transform_3, window_bounds = array<i64: 1, 128, 128>}]} {
    %c0 = arith.constant 0 : index
    %c0_0 = arith.constant 0 : index
    %c0_1 = arith.constant 0 : index
    %0 = vector.load %arg1[%c0, %c0_0, %c0_1] : memref<1x128x33xbf16, #tpu.memory_space<vmem>>, vector<1x128x33xbf16>
    %1 = vector.shape_cast %0 : vector<1x128x33xbf16> to vector<128x33xbf16>
    %c0_2 = arith.constant 0 : index
    %c0_3 = arith.constant 0 : index
    %2 = vector.load %arg2[%c0_2, %c0_3] : memref<33x384xbf16, #tpu.memory_space<vmem>>, vector<33x384xbf16>
    %cst = arith.constant dense<0.000000e+00> : vector<128x384xf32>
    %3 = tpu.matmul %1, %2, %cst {dimension_numbers = #tpu.dot_dimension_numbers<[1], [0], [0], [1], [0, 0, 1, 1], [], []>} : vector<128x33xbf16>, vector<33x384xbf16>, vector<128x384xf32> -> vector<128x384xf32>
    %4 = vector.shape_cast %3 : vector<128x384xf32> to vector<1x128x384xf32>
    %5 = vector.extract_strided_slice %4 {offsets = [0, 0, 0], sizes = [1, 128, 128], strides = [1, 1, 1]} : vector<1x128x384xf32> to vector<1x128x128xf32>
    %6 = arith.truncf %5 : vector<1x128x128xf32> to vector<1x128x128xbf16>
    %7 = vector.extract_strided_slice %4 {offsets = [0, 0, 128], sizes = [1, 128, 128], strides = [1, 1, 1]} : vector<1x128x384xf32> to vector<1x128x128xf32>
    %8 = arith.truncf %7 : vector<1x128x128xf32> to vector<1x128x128xbf16>
    %9 = vector.extract_strided_slice %4 {offsets = [0, 0, 256], sizes = [1, 128, 128], strides = [1, 1, 1]} : vector<1x128x384xf32> to vector<1x128x128xf32>
    %10 = arith.truncf %9 : vector<1x128x128xf32> to vector<1x128x128xbf16>
    "tpu.trace_start"() <{level = 10 : i32, message = "bqd,bkd->bqk"}> : () -> ()
    %cst_4 = arith.constant dense<0.000000e+00> : vector<1x128x128xf32>
    %11 = tpu.matmul %6, %8, %cst_4 {dimension_numbers = #tpu.dot_dimension_numbers<[2], [2], [1], [1], [0, 0, 0, 1, 1, 1], [0], [0]>} : vector<1x128x128xbf16>, vector<1x128x128xbf16>, vector<1x128x128xf32> -> vector<1x128x128xf32>
    "tpu.trace_stop"() : () -> ()
    %12 = tpu.iota {dimensions = array<i32: 2>} : vector<1x128x128xi32>
    %c8_i32 = arith.constant 8 : i32
    %13 = vector.broadcast %c8_i32 : i32 to vector<1x128x128xi32>
    %14 = arith.cmpi slt, %12, %13 : vector<1x128x128xi32>
    %cst_5 = arith.constant -1.000000e+30 : f32
    %15 = vector.broadcast %cst_5 : f32 to vector<1x128x128xf32>
    %16 = arith.select %14, %11, %15 : vector<1x128x128xi1>, vector<1x128x128xf32>
    %cst_6 = arith.constant dense<0xFF800000> : vector<1x128xf32>
    %17 = vector.multi_reduction <maximumf>, %16, %cst_6 [2] : vector<1x128x128xf32> to vector<1x128xf32>
    %18 = vector.shape_cast %17 : vector<1x128xf32> to vector<1x128x1xf32>
    %19 = vector.broadcast %18 : vector<1x128x1xf32> to vector<1x128x128xf32>
    %20 = arith.subf %16, %19 : vector<1x128x128xf32>
    %21 = math.exp %20 : vector<1x128x128xf32>
    %cst_7 = arith.constant dense<0.000000e+00> : vector<1x128xf32>
    %22 = vector.multi_reduction <add>, %21, %cst_7 [2] : vector<1x128x128xf32> to vector<1x128xf32>
    %23 = vector.shape_cast %22 : vector<1x128xf32> to vector<1x128x1xf32>
    %24 = tpu.reciprocal %23 {approx = true} : vector<1x128x1xf32> -> vector<1x128x1xf32>
    %25 = vector.broadcast %24 : vector<1x128x1xf32> to vector<1x128x128xf32>
    %26 = arith.mulf %21, %25 : vector<1x128x128xf32>
    %27 = arith.truncf %26 : vector<1x128x128xf32> to vector<1x128x128xbf16>
    "tpu.trace_start"() <{level = 10 : i32, message = "bqk,bkd->bqd"}> : () -> ()
    %cst_8 = arith.constant dense<0.000000e+00> : vector<1x128x128xf32>
    %28 = tpu.matmul %27, %10, %cst_8 {dimension_numbers = #tpu.dot_dimension_numbers<[2], [1], [1], [2], [0, 0, 0, 1, 1, 2], [0], [0]>} : vector<1x128x128xbf16>, vector<1x128x128xbf16>, vector<1x128x128xf32> -> vector<1x128x128xf32>
    "tpu.trace_stop"() : () -> ()
    %29 = arith.truncf %28 : vector<1x128x128xf32> to vector<1x128x128xbf16>
    %c0_9 = arith.constant 0 : index
    %c0_10 = arith.constant 0 : index
    %c0_11 = arith.constant 0 : index
    %30 = vector.load %arg3[%c0_9, %c0_10, %c0_11] : memref<1x128x128xbf16, #tpu.memory_space<vmem>>, vector<1x128x128xbf16>
    tpu.vector_store %arg3[%c0_9, %c0_10, %c0_11], %29 {strides = array<i32>} : memref<1x128x128xbf16, #tpu.memory_space<vmem>>, vector<1x128x128xbf16>,
    %c0_12 = arith.constant 0 : index
    %c0_13 = arith.constant 0 : index
    %c0_14 = arith.constant 0 : index
    %31 = vector.load %arg4[%c0_12, %c0_13, %c0_14] : memref<1x128x128xbf16, #tpu.memory_space<vmem>>, vector<1x128x128xbf16>
    tpu.vector_store %arg4[%c0_12, %c0_13, %c0_14], %27 {strides = array<i32>} : memref<1x128x128xbf16, #tpu.memory_space<vmem>>, vector<1x128x128xbf16>,
    return
  }
  func.func @transform_0(%arg0: i32) -> (i32, i32, i32) {
    %c0_i32 = arith.constant 0 : i32
    %c0_i32_0 = arith.constant 0 : i32
    %c0_i32_1 = arith.constant 0 : i32
    return %arg0, %c0_i32, %c0_i32_0 : i32, i32, i32
  }
  func.func @transform_1(%arg0: i32) -> (i32, i32) {
    %c0_i32 = arith.constant 0 : i32
    %c0_i32_0 = arith.constant 0 : i32
    %c0_i32_1 = arith.constant 0 : i32
    return %c0_i32, %c0_i32_0 : i32, i32
  }
  func.func @transform_2(%arg0: i32) -> (i32, i32, i32) {
    %c0_i32 = arith.constant 0 : i32
    %c0_i32_0 = arith.constant 0 : i32
    %c0_i32_1 = arith.constant 0 : i32
    return %arg0, %c0_i32, %c0_i32_0 : i32, i32, i32
  }
  func.func @transform_3(%arg0: i32) -> (i32, i32, i32) {
    %c0_i32 = arith.constant 0 : i32
    %c0_i32_0 = arith.constant 0 : i32
    %c0_i32_1 = arith.constant 0 : i32
    return %arg0, %c0_i32, %c0_i32_0 : i32, i32, i32
  }
}

</mosaic_0001>

<llo_original>
// kernel: forward.1
$region0: #{forward.1}
  #allocation0 [shape = 'u32[]', space=smem, size = 0x4, offset = 0x4, fixed_abs, tag = 'smem constant byte address 0x4 - core index']
  #allocation1 [shape = 'u32[72,128]{1,0:T(1,128)}', space=vmem, size = 0x9000, scoped, tag = 'internal scratch']
  %s0 = inlined_call_operand.vmem [shape: bf16[2,128,33], index: 0, kind: input, shape index: {}]
  %s1 = inlined_call_operand.vmem [shape: bf16[33,384], index: 1, kind: input, shape index: {}]
  %s2 = inlined_call_operand.vmem [shape: bf16[2,128,128], index: 2, kind: output, shape index: {0}]
  %s3 = inlined_call_operand.vmem [shape: bf16[2,128,128], index: 3, kind: output, shape index: {1}]
  %4 = xla_tuple %s2, %s3
  %s5 = sld [smem:[#allocation0]]
  $region49: #{forward.1} parent=0
    _
  %s7 = ssub.s32 1, %s5
  %s8 = scalar_select 0, %s7, %s5
  loop: start=0, step=1, limit=4
  $region2: #{forward.1} parent=0 // loop_pre_header
    _
  $region3: #{forward.1} parent=0 // loop_header
    %s10 = sphi 0, %s14
    %p11 = scmp.ge.s32.totalorder %s10, 4
    %s20 = sphi 0, %s22
    %s23 = sphi 0, %s20
    %s24 = sphi 0, %s23
    %s40 = sphi 0, %s24
    %s44 = sphi 0, %s44
    %s46 = sphi 0, %s44
    %s47 = sphi 0, %s46
    %s61 = sphi 0, %s47
    %s67 = sphi 0, %s69
    %s70 = sphi 0, %s67
    %s71 = sphi 0, %s70
    %s87 = sphi 0, %s71
    %s93 = sphi 0, %s95
    %s96 = sphi 0, %s93
    %s97 = sphi 0, %s96
    %s113 = sphi 0, %s97
  $region4: #{forward.1} parent=0 // loop_header_branch
    %13 = sbr.rel (%p11) target = $region8
  $region5: #{forward.1} parent=0 // loop_body
    %s15 = ssub.s32 %s10, 1
    %s16 = ssub.s32 %s10, 2
    %s17 = sadd.s32 %s10, 1
    %s18 = ssub.s32 %s10, %s17
    %p19 = scmp.eq.s32.totalorder %s18, 0
    %s21 = sadd.s32 %s20, 1
    %s22 = scalar_select %p19, %s20, %s21
    %p25 = pneg %p19
    %p26 = scmp.eq.s32.totalorder %s10, 1
    %p27 = por %p25, %p26
    %p28 = scmp.ne.s32.totalorder %s20, %s23
    %p29 = scmp.eq.s32.totalorder %s10, 0
    %p30 = por %p28, %p29
    %p31 = scmp.ne.s32.totalorder %s20, %s23
    %p32 = scmp.eq.s32.totalorder %s15, 1
    %p33 = por %p31, %p32
    %p34 = scmp.ne.s32.totalorder %s23, %s24
    %p35 = scmp.eq.s32.totalorder %s15, 0
    %p36 = por %p34, %p35
    %p37 = scmp.ne.s32.totalorder %s23, %s24
    %p38 = scmp.eq.s32.totalorder %s16, 1
    %p39 = por %p37, %p38
    %p41 = scmp.ne.s32.totalorder %s24, %s40
    %p42 = scmp.eq.s32.totalorder %s16, 0
    %p43 = por %p41, %p42
    %s45 = sadd.s32 %s44, 1
    %p48 = scmp.eq.s32.totalorder %s10, 1
    %p49 = scmp.ne.s32.totalorder %s44, %s46
    %p50 = scmp.eq.s32.totalorder %s10, 0
    %p51 = por %p49, %p50
    %p52 = scmp.ne.s32.totalorder %s44, %s46
    %p53 = scmp.eq.s32.totalorder %s15, 1
    %p54 = por %p52, %p53
    %p55 = scmp.ne.s32.totalorder %s46, %s47
    %p56 = scmp.eq.s32.totalorder %s15, 0
    %p57 = por %p55, %p56
    %p58 = scmp.ne.s32.totalorder %s46, %s47
    %p59 = scmp.eq.s32.totalorder %s16, 1
    %p60 = por %p58, %p59
    %p62 = scmp.ne.s32.totalorder %s47, %s61
    %p63 = scmp.eq.s32.totalorder %s16, 0
    %p64 = por %p62, %p63
    %s65 = ssub.s32 %s10, %s17
    %p66 = scmp.eq.s32.totalorder %s65, 0
    %s68 = sadd.s32 %s67, 1
    %s69 = scalar_select %p66, %s67, %s68
    %p72 = pneg %p66
    %p73 = scmp.eq.s32.totalorder %s10, 1
    %p74 = por %p72, %p73
    %p75 = scmp.ne.s32.totalorder %s67, %s70
    %p76 = scmp.eq.s32.totalorder %s10, 0
    %p77 = por %p75, %p76
    %p78 = scmp.ne.s32.totalorder %s67, %s70
    %p79 = scmp.eq.s32.totalorder %s15, 1
    %p80 = por %p78, %p79
    %p81 = scmp.ne.s32.totalorder %s70, %s71
    %p82 = scmp.eq.s32.totalorder %s15, 0
    %p83 = por %p81, %p82
    %p84 = scmp.ne.s32.totalorder %s70, %s71
    %p85 = scmp.eq.s32.totalorder %s16, 1
    %p86 = por %p84, %p85
    %p88 = scmp.ne.s32.totalorder %s71, %s87
    %p89 = scmp.eq.s32.totalorder %s16, 0
    %p90 = por %p88, %p89
    %s91 = ssub.s32 %s10, %s17
    %p92 = scmp.eq.s32.totalorder %s91, 0
    %s94 = sadd.s32 %s93, 1
    %s95 = scalar_select %p92, %s93, %s94
    %p98 = pneg %p92
    %p99 = scmp.eq.s32.totalorder %s10, 1
    %p100 = por %p98, %p99
    %p101 = scmp.ne.s32.totalorder %s93, %s96
    %p102 = scmp.eq.s32.totalorder %s10, 0
    %p103 = por %p101, %p102
    %p104 = scmp.ne.s32.totalorder %s93, %s96
    %p105 = scmp.eq.s32.totalorder %s15, 1
    %p106 = por %p104, %p105
    %p107 = scmp.ne.s32.totalorder %s96, %s97
    %p108 = scmp.eq.s32.totalorder %s15, 0
    %p109 = por %p107, %p108
    %p110 = scmp.ne.s32.totalorder %s96, %s97
    %p111 = scmp.eq.s32.totalorder %s16, 1
    %p112 = por %p110, %p111
    %p114 = scmp.ne.s32.totalorder %s97, %s113
    %p115 = scmp.eq.s32.totalorder %s16, 0
    %p116 = por %p114, %p115
    %p117 = scmp.le.s32.totalorder 1, %s10
    %p118 = scmp.lt.s32.totalorder %s10, 3
    %p119 = pnand %p117, %p118
    %p120 = pneg %p119
    // Predicated region
    $region9: #{forward.1} parent=5 // pred_check
      _
    $region10: #{forward.1} parent=5 // pred_check_branch
      %122 = sbr.rel (%p119) target = $region12
    $region11: #{forward.1} parent=5 // pred_region
      %s123 = ssub.s32 %s10, 1
      // Predicated region
      $region13: #{forward.1} parent=11 // pred_check
        %p124 = pneg %p57
      $region14: #{forward.1} parent=11 // pred_check_branch
        %126 = sbr.rel (%p124) target = $region16
      $region15: #{forward.1} parent=11 // pred_region
        _
      $region16: #{forward.1} parent=11 // pred_fallthru
        _
    $region12: #{forward.1} parent=5 // pred_fallthru
      _
    %p127 = scmp.lt.s32.totalorder %s10, 2
    // Predicated region
    $region17: #{forward.1} parent=5 // pred_check
      %p128 = pneg %p127
    $region18: #{forward.1} parent=5 // pred_check_branch
      %130 = sbr.rel (%p128) target = $region20
    $region19: #{forward.1} parent=5 // pred_region
      // Predicated region
      $region21: #{forward.1} parent=19 // pred_check
        %p131 = pneg %p30
      $region22: #{forward.1} parent=19 // pred_check_branch
        %133 = sbr.rel (%p131) target = $region24
      $region23: #{forward.1} parent=19 // pred_region
        %p134 = scmp.lt.s32.totalorder %s10, 1
        %s135 = scalar_select %p134, %s10, 1
        %s136 = smul.addr %s135, 16
        %s137 = smul.addr %s136, 4
        %s138 = scalar_lea.vmem %s0, %s137
      $region24: #{forward.1} parent=19 // pred_fallthru
        _
    $region20: #{forward.1} parent=5 // pred_fallthru
      _
    %p139 = scmp.le.s32.totalorder 1, %s10
    %p140 = scmp.lt.s32.totalorder %s10, 3
    %p141 = pnand %p139, %p140
    %p142 = pneg %p141
    // Predicated region
    $region25: #{forward.1} parent=5 // pred_check
      _
    $region26: #{forward.1} parent=5 // pred_check_branch
      %144 = sbr.rel (%p141) target = $region28
    $region27: #{forward.1} parent=5 // pred_region
      %s145 = ssub.s32 %s10, 1
      %p146 = scmp.lt.s32.totalorder %s15, 1
      %s147 = scalar_select %p146, %s15, 1
      %s148 = smul.addr %s147, 16
      %s149 = smul.addr %s148, 4
      %s150 = scalar_lea.vmem %s0, %s149
      %p151 = pneg %p36
      %p152 = pneg %p33
      %p153 = pneg %p57
      %p154 = pneg %p54
      %p155 = pneg %p83
      %p156 = pneg %p80
      %p157 = scmp.lt.s32.totalorder %s15, 1
      %s158 = scalar_select %p157, %s15, 1
      %s159 = smul.addr %s158, 16
      %s160 = smul.addr %s159, 4
      %s161 = scalar_lea.vmem %s2, %s160
      %p162 = pneg %p109
      %p163 = pneg %p106
      %p164 = scmp.lt.s32.totalorder %s15, 1
      %s165 = scalar_select %p164, %s15, 1
      %s166 = smul.addr %s165, 16
      %s167 = smul.addr %s166, 4
      %s168 = scalar_lea.vmem %s3, %s167
      %p169 = scmp.lt.s32.totalorder %s15, 1
      %s170 = scalar_select %p169, %s15, 1
      %s171 = smul.addr %s170, 16
      %s172 = smul.addr %s171, 4
      %s173 = scalar_lea.vmem %s0, %s172
      %p174 = scmp.lt.s32.totalorder %s15, 1
      %s175 = scalar_select %p174, %s15, 1
      %s176 = smul.addr %s175, 16
      %s177 = smul.addr %s176, 4
      %s178 = scalar_lea.vmem %s2, %s177
      %p179 = scmp.lt.s32.totalorder %s15, 1
      %s180 = scalar_select %p179, %s15, 1
      %s181 = smul.addr %s180, 16
      %s182 = smul.addr %s181, 4
      %s183 = scalar_lea.vmem %s3, %s182
      %v185 = vld [vmem:[%s173] sm:$0xf]
      %v186 = vld [vmem:[%s173 + $0x4] sm:$0xf]
      %v187 = vld [vmem:[%s173 + $0x8] sm:$0xf]
      %v188 = vld [vmem:[%s173 + $0xc] sm:$0xf]
      %v189 = vld [vmem:[%s173 + $0x10] sm:$0xf]
      %v190 = vld [vmem:[%s173 + $0x14] sm:$0xf]
      %v191 = vld [vmem:[%s173 + $0x18] sm:$0xf]
      %v192 = vld [vmem:[%s173 + $0x1c] sm:$0xf]
      %v193 = vld [vmem:[%s173 + $0x20] sm:$0xf]
      %v194 = vld [vmem:[%s173 + $0x24] sm:$0xf]
      %v195 = vld [vmem:[%s173 + $0x28] sm:$0xf]
      %v196 = vld [vmem:[%s173 + $0x2c] sm:$0xf]
      %v197 = vld [vmem:[%s173 + $0x30] sm:$0xf]
      %v198 = vld [vmem:[%s173 + $0x34] sm:$0xf]
      %v199 = vld [vmem:[%s173 + $0x38] sm:$0xf]
      %v200 = vld [vmem:[%s173 + $0x3c] sm:$0xf]
      %v201 = vld [vmem:[%s1] sm:$0xff]
      %v202 = vld [vmem:[%s1 + $0x8] sm:$0xf]
      %v203 = vld [vmem:[%s1 + $0xc] sm:$0xff]
      %v204 = vld [vmem:[%s1 + $0x14] sm:$0xf]
      %v205 = vld [vmem:[%s1 + $0x18] sm:$0xff]
      %v206 = vld [vmem:[%s1 + $0x20] sm:$0xf]
      %v207 = vld [vmem:[%s1 + $0x24] sm:$0xff]
      %v208 = vld [vmem:[%s1 + $0x2c] sm:$0xf]
      %v209 = vld [vmem:[%s1 + $0x30] sm:$0x11]
      %v210 = vld [vmem:[%s1 + $0x38] sm:$0x1]
      %v227 = vunpack.c.l.b16 %v185
      %v228 = vunpack.c.l.b16 %v186
      %v229 = vunpack.c.l.b16 %v187
      %v230 = vunpack.c.l.b16 %v188
      %v231 = vunpack.c.l.b16 %v189
      %v232 = vunpack.c.l.b16 %v190
      %v233 = vunpack.c.l.b16 %v191
      %v234 = vunpack.c.l.b16 %v192
      %v235 = vunpack.c.l.b16 %v193
      %v236 = vunpack.c.l.b16 %v194
      %v237 = vunpack.c.l.b16 %v195
      %v238 = vunpack.c.l.b16 %v196
      %v239 = vunpack.c.l.b16 %v197
      %v240 = vunpack.c.l.b16 %v198
      %v241 = vunpack.c.l.b16 %v199
      %v242 = vunpack.c.l.b16 %v200
      %v243 = vpack.c.b16 %v228, %v227
      %v244 = vpack.c.b16 %v230, %v229
      %v245 = vpack.c.b16 %v232, %v231
      %v246 = vpack.c.b16 %v234, %v233
      %v247 = vpack.c.b16 %v236, %v235
      %v248 = vpack.c.b16 %v238, %v237
      %v249 = vpack.c.b16 %v240, %v239
      %v250 = vpack.c.b16 %v242, %v241
      %v261 = vunpack.c.l.b16 %v201
      %v262 = vunpack.c.h.b16 %v201
      %v263 = vunpack.c.l.b16 %v202
      %v264 = vunpack.c.l.b16 %v203
      %v265 = vunpack.c.h.b16 %v203
      %v266 = vunpack.c.l.b16 %v204
      %v267 = vunpack.c.l.b16 %v205
      %v268 = vunpack.c.h.b16 %v205
      %v269 = vunpack.c.l.b16 %v206
      %v270 = vunpack.c.l.b16 %v207
      %v271 = vunpack.c.h.b16 %v207
      %v272 = vunpack.c.l.b16 %v208
      %v273 = vunpack.c.l.b16 %v209
      %v274 = vunpack.c.h.b16 %v209
      %v275 = vunpack.c.l.b16 %v210
      %v276 = vpack.c.b16 %v264, %v261
      %v277 = vpack.c.b16 %v265, %v262
      %v278 = vpack.c.b16 %v266, %v263
      %v279 = vpack.c.b16 %v270, %v267
      %v280 = vpack.c.b16 %v271, %v268
      %v281 = vpack.c.b16 %v272, %v269
      %v282 = vpack.c.b16 %v273, %v273
      %v283 = vpack.c.b16 %v274, %v274
      %v284 = vpack.c.b16 %v275, %v275
      %vm291 = vcmask 269312
      %v293 = vsel %vm291, %v243, 0
      %v296 = vsel %vm291, %v244, 0
      %v299 = vsel %vm291, %v245, 0
      %v302 = vsel %vm291, %v246, 0
      %v305 = vsel %vm291, %v247, 0
      %v308 = vsel %vm291, %v248, 0
      %v311 = vsel %vm291, %v249, 0
      %v314 = vsel %vm291, %v250, 0
      %vm316 = vcmask 1040384
      %v317 = vsel 0, 4294967295, 65535
      %v318 = vsel %vm316, %v317, 0
      %v320 = vand.u32 %v282, %v318
      %v323 = vand.u32 %v283, %v318
      %v326 = vand.u32 %v284, %v318
      %328 = vmatpush.bf16.msra.mxu0 0
      %329 = vmatpush.bf16.msra.mxu0 0
      %330 = vmatpush.bf16.msra.mxu0 0
      %331 = vmatpush.bf16.msra.mxu0 0
      %332 = vmatpush.bf16.msra.mxu0 0
      %333 = vmatpush.bf16.msra.mxu0 %v320
      %334 = vmatpush.bf16.msra.mxu0 %v279
      %335 = vmatpush.bf16.msra.mxu0 %v276
      %336 = vmatmul.bf16.gmra.mxu0 %v293
      %v337 = vpop.f32.mrf.mxu0
      %v338 = vadd.f32 0.0, %v337
      %v339 = vpop.f32.mrf.mxu0
      %v340 = vadd.f32 0.0, %v339
      %341 = vmatmul.bf16.gmra.mxu0 %v296
      %v342 = vpop.f32.mrf.mxu0
      %v343 = vadd.f32 0.0, %v342
      %v344 = vpop.f32.mrf.mxu0
      %v345 = vadd.f32 0.0, %v344
      %346 = vmatmul.bf16.gmra.mxu0 %v299
      %v347 = vpop.f32.mrf.mxu0
      %v348 = vadd.f32 0.0, %v347
      %v349 = vpop.f32.mrf.mxu0
      %v350 = vadd.f32 0.0, %v349
      %351 = vmatmul.bf16.gmra.mxu0 %v302
      %v352 = vpop.f32.mrf.mxu0
      %v353 = vadd.f32 0.0, %v352
      %v354 = vpop.f32.mrf.mxu0
      %v355 = vadd.f32 0.0, %v354
      %356 = vmatmul.bf16.gmra.mxu0 %v305
      %v357 = vpop.f32.mrf.mxu0
      %v358 = vadd.f32 0.0, %v357
      %v359 = vpop.f32.mrf.mxu0
      %v360 = vadd.f32 0.0, %v359
      %361 = vmatmul.bf16.gmra.mxu0 %v308
      %v362 = vpop.f32.mrf.mxu0
      %v363 = vadd.f32 0.0, %v362
      %v364 = vpop.f32.mrf.mxu0
      %v365 = vadd.f32 0.0, %v364
      %366 = vmatmul.bf16.gmra.mxu0 %v311
      %v367 = vpop.f32.mrf.mxu0
      %v368 = vadd.f32 0.0, %v367
      %v369 = vpop.f32.mrf.mxu0
      %v370 = vadd.f32 0.0, %v369
      %371 = vmatmul.bf16.gmra.mxu0 %v314
      %v372 = vpop.f32.mrf.mxu0
      %v373 = vadd.f32 0.0, %v372
      %v374 = vpop.f32.mrf.mxu0
      %v375 = vadd.f32 0.0, %v374
      %376 = vdwg.mxu0
      %377 = vmatpush.bf16.msra.mxu0 0
      %378 = vmatpush.bf16.msra.mxu0 0
      %379 = vmatpush.bf16.msra.mxu0 0
      %380 = vmatpush.bf16.msra.mxu0 0
      %381 = vmatpush.bf16.msra.mxu0 0
      %382 = vmatpush.bf16.msra.mxu0 %v323
      %383 = vmatpush.bf16.msra.mxu0 %v280
      %384 = vmatpush.bf16.msra.mxu0 %v277
      %385 = vmatmul.bf16.gmra.mxu0 %v293
      %v386 = vpop.f32.mrf.mxu0
      %v387 = vadd.f32 0.0, %v386
      %v388 = vpop.f32.mrf.mxu0
      %v389 = vadd.f32 0.0, %v388
      %390 = vmatmul.bf16.gmra.mxu0 %v296
      %v391 = vpop.f32.mrf.mxu0
      %v392 = vadd.f32 0.0, %v391
      %v393 = vpop.f32.mrf.mxu0
      %v394 = vadd.f32 0.0, %v393
      %395 = vmatmul.bf16.gmra.mxu0 %v299
      %v396 = vpop.f32.mrf.mxu0
      %v397 = vadd.f32 0.0, %v396
      %v398 = vpop.f32.mrf.mxu0
      %v399 = vadd.f32 0.0, %v398
      %400 = vmatmul.bf16.gmra.mxu0 %v302
      %v401 = vpop.f32.mrf.mxu0
      %v402 = vadd.f32 0.0, %v401
      %v403 = vpop.f32.mrf.mxu0
      %v404 = vadd.f32 0.0, %v403
      %405 = vmatmul.bf16.gmra.mxu0 %v305
      %v406 = vpop.f32.mrf.mxu0
      %v407 = vadd.f32 0.0, %v406
      %v408 = vpop.f32.mrf.mxu0
      %v409 = vadd.f32 0.0, %v408
      %410 = vmatmul.bf16.gmra.mxu0 %v308
      %v411 = vpop.f32.mrf.mxu0
      %v412 = vadd.f32 0.0, %v411
      %v413 = vpop.f32.mrf.mxu0
      %v414 = vadd.f32 0.0, %v413
      %415 = vmatmul.bf16.gmra.mxu0 %v311
      %v416 = vpop.f32.mrf.mxu0
      %v417 = vadd.f32 0.0, %v416
      %v418 = vpop.f32.mrf.mxu0
      %v419 = vadd.f32 0.0, %v418
      %420 = vmatmul.bf16.gmra.mxu0 %v314
      %v421 = vpop.f32.mrf.mxu0
      %v422 = vadd.f32 0.0, %v421
      %v423 = vpop.f32.mrf.mxu0
      %v424 = vadd.f32 0.0, %v423
      %425 = vdwg.mxu0
      %426 = vmatpush.bf16.msra.mxu0 0
      %427 = vmatpush.bf16.msra.mxu0 0
      %428 = vmatpush.bf16.msra.mxu0 0
      %429 = vmatpush.bf16.msra.mxu0 0
      %430 = vmatpush.bf16.msra.mxu0 0
      %431 = vmatpush.bf16.msra.mxu0 %v326
      %432 = vmatpush.bf16.msra.mxu0 %v281
      %433 = vmatpush.bf16.msra.mxu0 %v278
      %434 = vmatmul.bf16.gmra.mxu0 %v293
      %v435 = vpop.f32.mrf.mxu0
      %v436 = vadd.f32 0.0, %v435
      %v437 = vpop.f32.mrf.mxu0
      %v438 = vadd.f32 0.0, %v437
      %439 = vmatmul.bf16.gmra.mxu0 %v296
      %v440 = vpop.f32.mrf.mxu0
      %v441 = vadd.f32 0.0, %v440
      %v442 = vpop.f32.mrf.mxu0
      %v443 = vadd.f32 0.0, %v442
      %444 = vmatmul.bf16.gmra.mxu0 %v299
      %v445 = vpop.f32.mrf.mxu0
      %v446 = vadd.f32 0.0, %v445
      %v447 = vpop.f32.mrf.mxu0
      %v448 = vadd.f32 0.0, %v447
      %449 = vmatmul.bf16.gmra.mxu0 %v302
      %v450 = vpop.f32.mrf.mxu0
      %v451 = vadd.f32 0.0, %v450
      %v452 = vpop.f32.mrf.mxu0
      %v453 = vadd.f32 0.0, %v452
      %454 = vmatmul.bf16.gmra.mxu0 %v305
      %v455 = vpop.f32.mrf.mxu0
      %v456 = vadd.f32 0.0, %v455
      %v457 = vpop.f32.mrf.mxu0
      %v458 = vadd.f32 0.0, %v457
      %459 = vmatmul.bf16.gmra.mxu0 %v308
      %v460 = vpop.f32.mrf.mxu0
      %v461 = vadd.f32 0.0, %v460
      %v462 = vpop.f32.mrf.mxu0
      %v463 = vadd.f32 0.0, %v462
      %464 = vmatmul.bf16.gmra.mxu0 %v311
      %v465 = vpop.f32.mrf.mxu0
      %v466 = vadd.f32 0.0, %v465
      %v467 = vpop.f32.mrf.mxu0
      %v468 = vadd.f32 0.0, %v467
      %469 = vmatmul.bf16.gmra.mxu0 %v314
      %v470 = vpop.f32.mrf.mxu0
      %v471 = vadd.f32 0.0, %v470
      %v472 = vpop.f32.mrf.mxu0
      %v473 = vadd.f32 0.0, %v472
      %474 = vdwg.mxu0
      %v475 = vpack.c.bf16 %v338, %v338
      %v476 = vpack.c.bf16 %v340, %v340
      %v477 = vpack.c.bf16 %v343, %v343
      %v478 = vpack.c.bf16 %v345, %v345
      %v479 = vpack.c.bf16 %v348, %v348
      %v480 = vpack.c.bf16 %v350, %v350
      %v481 = vpack.c.bf16 %v353, %v353
      %v482 = vpack.c.bf16 %v355, %v355
      %v483 = vpack.c.bf16 %v358, %v358
      %v484 = vpack.c.bf16 %v360, %v360
      %v485 = vpack.c.bf16 %v363, %v363
      %v486 = vpack.c.bf16 %v365, %v365
      %v487 = vpack.c.bf16 %v368, %v368
      %v488 = vpack.c.bf16 %v370, %v370
      %v489 = vpack.c.bf16 %v373, %v373
      %v490 = vpack.c.bf16 %v375, %v375
      %v491 = vpack.c.bf16 %v387, %v387
      %v492 = vpack.c.bf16 %v389, %v389
      %v493 = vpack.c.bf16 %v392, %v392
      %v494 = vpack.c.bf16 %v394, %v394
      %v495 = vpack.c.bf16 %v397, %v397
      %v496 = vpack.c.bf16 %v399, %v399
      %v497 = vpack.c.bf16 %v402, %v402
      %v498 = vpack.c.bf16 %v404, %v404
      %v499 = vpack.c.bf16 %v407, %v407
      %v500 = vpack.c.bf16 %v409, %v409
      %v501 = vpack.c.bf16 %v412, %v412
      %v502 = vpack.c.bf16 %v414, %v414
      %v503 = vpack.c.bf16 %v417, %v417
      %v504 = vpack.c.bf16 %v419, %v419
      %v505 = vpack.c.bf16 %v422, %v422
      %v506 = vpack.c.bf16 %v424, %v424
      %v507 = vpack.c.bf16 %v436, %v436
      %v508 = vpack.c.bf16 %v438, %v438
      %v509 = vpack.c.bf16 %v441, %v441
      %v510 = vpack.c.bf16 %v443, %v443
      %v511 = vpack.c.bf16 %v446, %v446
      %v512 = vpack.c.bf16 %v448, %v448
      %v513 = vpack.c.bf16 %v451, %v451
      %v514 = vpack.c.bf16 %v453, %v453
      %v515 = vpack.c.bf16 %v456, %v456
      %v516 = vpack.c.bf16 %v458, %v458
      %v517 = vpack.c.bf16 %v461, %v461
      %v518 = vpack.c.bf16 %v463, %v463
      %v519 = vpack.c.bf16 %v466, %v466
      %v520 = vpack.c.bf16 %v468, %v468
      %v521 = vpack.c.bf16 %v471, %v471
      %v522 = vpack.c.bf16 %v473, %v473
      %v539 = vunpack.c.l.b16 %v475
      %v540 = vunpack.c.l.b16 %v476
      %v541 = vunpack.c.l.b16 %v477
      %v542 = vunpack.c.l.b16 %v478
      %v543 = vunpack.c.l.b16 %v479
      %v544 = vunpack.c.l.b16 %v480
      %v545 = vunpack.c.l.b16 %v481
      %v546 = vunpack.c.l.b16 %v482
      %v547 = vunpack.c.l.b16 %v483
      %v548 = vunpack.c.l.b16 %v484
      %v549 = vunpack.c.l.b16 %v485
      %v550 = vunpack.c.l.b16 %v486
      %v551 = vunpack.c.l.b16 %v487
      %v552 = vunpack.c.l.b16 %v488
      %v553 = vunpack.c.l.b16 %v489
      %v554 = vunpack.c.l.b16 %v490
      %v555 = vpack.c.b16 %v540, %v539
      %v556 = vpack.c.b16 %v542, %v541
      %v557 = vpack.c.b16 %v544, %v543
      %v558 = vpack.c.b16 %v546, %v545
      %v559 = vpack.c.b16 %v548, %v547
      %v560 = vpack.c.b16 %v550, %v549
      %v561 = vpack.c.b16 %v552, %v551
      %v562 = vpack.c.b16 %v554, %v553
      %v587 = vunpack.c.l.b16 %v491
      %v588 = vunpack.c.l.b16 %v492
      %v589 = vunpack.c.l.b16 %v493
      %v590 = vunpack.c.l.b16 %v494
      %v591 = vunpack.c.l.b16 %v495
      %v592 = vunpack.c.l.b16 %v496
      %v593 = vunpack.c.l.b16 %v497
      %v594 = vunpack.c.l.b16 %v498
      %v595 = vunpack.c.l.b16 %v499
      %v596 = vunpack.c.l.b16 %v500
      %v597 = vunpack.c.l.b16 %v501
      %v598 = vunpack.c.l.b16 %v502
      %v599 = vunpack.c.l.b16 %v503
      %v600 = vunpack.c.l.b16 %v504
      %v601 = vunpack.c.l.b16 %v505
      %v602 = vunpack.c.l.b16 %v506
      %v603 = vpack.c.b16 %v588, %v587
      %v604 = vpack.c.b16 %v590, %v589
      %v605 = vpack.c.b16 %v592, %v591
      %v606 = vpack.c.b16 %v594, %v593
      %v607 = vpack.c.b16 %v596, %v595
      %v608 = vpack.c.b16 %v598, %v597
      %v609 = vpack.c.b16 %v600, %v599
      %v610 = vpack.c.b16 %v602, %v601
      %619 = vmatpush.bf16.xpose.msra.mxu0 %v610
      %620 = vmatpush.bf16.xpose.msra.mxu0 %v609
      %621 = vmatpush.bf16.xpose.msra.mxu0 %v608
      %622 = vmatpush.bf16.xpose.msra.mxu0 %v607
      %623 = vmatpush.bf16.xpose.msra.mxu0 %v606
      %624 = vmatpush.bf16.xpose.msra.mxu0 %v605
      %625 = vmatpush.bf16.xpose.msra.mxu0 %v604
      %626 = vmatpush.bf16.xpose.msra.mxu0 %v603
      %627 = vmatmul.bf16.gmra.mxu0 %v555
      %v628 = vpop.f32.mrf.mxu0
      %v629 = vadd.f32 0.0, %v628
      %v630 = vpop.f32.mrf.mxu0
      %v631 = vadd.f32 0.0, %v630
      %632 = vmatmul.bf16.gmra.mxu0 %v556
      %v633 = vpop.f32.mrf.mxu0
      %v634 = vadd.f32 0.0, %v633
      %v635 = vpop.f32.mrf.mxu0
      %v636 = vadd.f32 0.0, %v635
      %637 = vmatmul.bf16.gmra.mxu0 %v557
      %v638 = vpop.f32.mrf.mxu0
      %v639 = vadd.f32 0.0, %v638
      %v640 = vpop.f32.mrf.mxu0
      %v641 = vadd.f32 0.0, %v640
      %642 = vmatmul.bf16.gmra.mxu0 %v558
      %v643 = vpop.f32.mrf.mxu0
      %v644 = vadd.f32 0.0, %v643
      %v645 = vpop.f32.mrf.mxu0
      %v646 = vadd.f32 0.0, %v645
      %647 = vmatmul.bf16.gmra.mxu0 %v559
      %v648 = vpop.f32.mrf.mxu0
      %v649 = vadd.f32 0.0, %v648
      %v650 = vpop.f32.mrf.mxu0
      %v651 = vadd.f32 0.0, %v650
      %652 = vmatmul.bf16.gmra.mxu0 %v560
      %v653 = vpop.f32.mrf.mxu0
      %v654 = vadd.f32 0.0, %v653
      %v655 = vpop.f32.mrf.mxu0
      %v656 = vadd.f32 0.0, %v655
      %657 = vmatmul.bf16.gmra.mxu0 %v561
      %v658 = vpop.f32.mrf.mxu0
      %v659 = vadd.f32 0.0, %v658
      %v660 = vpop.f32.mrf.mxu0
      %v661 = vadd.f32 0.0, %v660
      %662 = vmatmul.bf16.gmra.mxu0 %v562
      %v663 = vpop.f32.mrf.mxu0
      %v664 = vadd.f32 0.0, %v663
      %v665 = vpop.f32.mrf.mxu0
      %v666 = vadd.f32 0.0, %v665
      %667 = vdwg.mxu0
      %v668 = vlaneseq
      %v669 = vand.u32 %v668, 127
      %vm670 = vcmp.lt.s32.totalorder %v669, 8
      %v671 = vsel %vm670, %v629, -1e+30
      %v672 = vsel %vm670, %v631, -1e+30
      %v673 = vsel %vm670, %v634, -1e+30
      %v674 = vsel %vm670, %v636, -1e+30
      %v675 = vsel %vm670, %v639, -1e+30
      %v676 = vsel %vm670, %v641, -1e+30
      %v677 = vsel %vm670, %v644, -1e+30
      %v678 = vsel %vm670, %v646, -1e+30
      %v679 = vsel %vm670, %v649, -1e+30
      %v680 = vsel %vm670, %v651, -1e+30
      %v681 = vsel %vm670, %v654, -1e+30
      %v682 = vsel %vm670, %v656, -1e+30
      %v683 = vsel %vm670, %v659, -1e+30
      %v684 = vsel %vm670, %v661, -1e+30
      %v685 = vsel %vm670, %v664, -1e+30
      %v686 = vsel %vm670, %v666, -1e+30
      %687 = vmax.xlane.f32.xlu0 %v671
      %v688 = vpop.xlane.xlu0 %687
      %689 = vmax.xlane.f32.xlu0 %v672
      %v690 = vpop.xlane.xlu0 %689
      %691 = vmax.xlane.f32.xlu0 %v673
      %v692 = vpop.xlane.xlu0 %691
      %693 = vmax.xlane.f32.xlu0 %v674
      %v694 = vpop.xlane.xlu0 %693
      %695 = vmax.xlane.f32.xlu0 %v675
      %v696 = vpop.xlane.xlu0 %695
      %697 = vmax.xlane.f32.xlu0 %v676
      %v698 = vpop.xlane.xlu0 %697
      %699 = vmax.xlane.f32.xlu0 %v677
      %v700 = vpop.xlane.xlu0 %699
      %701 = vmax.xlane.f32.xlu0 %v678
      %v702 = vpop.xlane.xlu0 %701
      %703 = vmax.xlane.f32.xlu0 %v679
      %v704 = vpop.xlane.xlu0 %703
      %705 = vmax.xlane.f32.xlu0 %v680
      %v706 = vpop.xlane.xlu0 %705
      %707 = vmax.xlane.f32.xlu0 %v681
      %v708 = vpop.xlane.xlu0 %707
      %709 = vmax.xlane.f32.xlu0 %v682
      %v710 = vpop.xlane.xlu0 %709
      %711 = vmax.xlane.f32.xlu0 %v683
      %v712 = vpop.xlane.xlu0 %711
      %713 = vmax.xlane.f32.xlu0 %v684
      %v714 = vpop.xlane.xlu0 %713
      %715 = vmax.xlane.f32.xlu0 %v685
      %v716 = vpop.xlane.xlu0 %715
      %717 = vmax.xlane.f32.xlu0 %v686
      %v718 = vpop.xlane.xlu0 %717
      %v719 = vsub.f32 %v671, %v688
      %v720 = vsub.f32 %v672, %v690
      %v721 = vsub.f32 %v673, %v692
      %v722 = vsub.f32 %v674, %v694
      %v723 = vsub.f32 %v675, %v696
      %v724 = vsub.f32 %v676, %v698
      %v725 = vsub.f32 %v677, %v700
      %v726 = vsub.f32 %v678, %v702
      %v727 = vsub.f32 %v679, %v704
      %v728 = vsub.f32 %v680, %v706
      %v729 = vsub.f32 %v681, %v708
      %v730 = vsub.f32 %v682, %v710
      %v731 = vsub.f32 %v683, %v712
      %v732 = vsub.f32 %v684, %v714
      %v733 = vsub.f32 %v685, %v716
      %v734 = vsub.f32 %v686, %v718
      %v735 = vmul.f32 %v719, 1.442695
      %v736 = vpow.pop %v735
      %v737 = vmul.f32 %v720, 1.442695
      %v738 = vpow.pop %v737
      %v739 = vmul.f32 %v721, 1.442695
      %v740 = vpow.pop %v739
      %v741 = vmul.f32 %v722, 1.442695
      %v742 = vpow.pop %v741
      %v743 = vmul.f32 %v723, 1.442695
      %v744 = vpow.pop %v743
      %v745 = vmul.f32 %v724, 1.442695
      %v746 = vpow.pop %v745
      %v747 = vmul.f32 %v725, 1.442695
      %v748 = vpow.pop %v747
      %v749 = vmul.f32 %v726, 1.442695
      %v750 = vpow.pop %v749
      %v751 = vmul.f32 %v727, 1.442695
      %v752 = vpow.pop %v751
      %v753 = vmul.f32 %v728, 1.442695
      %v754 = vpow.pop %v753
      %v755 = vmul.f32 %v729, 1.442695
      %v756 = vpow.pop %v755
      %v757 = vmul.f32 %v730, 1.442695
      %v758 = vpow.pop %v757
      %v759 = vmul.f32 %v731, 1.442695
      %v760 = vpow.pop %v759
      %v761 = vmul.f32 %v732, 1.442695
      %v762 = vpow.pop %v761
      %v763 = vmul.f32 %v733, 1.442695
      %v764 = vpow.pop %v763
      %v765 = vmul.f32 %v734, 1.442695
      %v766 = vpow.pop %v765
      %767 = vadd.xlane.f32.xlu0 %v736
      %v768 = vpop.xlane.xlu0 %767
      %769 = vadd.xlane.f32.xlu0 %v738
      %v770 = vpop.xlane.xlu0 %769
      %771 = vadd.xlane.f32.xlu0 %v740
      %v772 = vpop.xlane.xlu0 %771
      %773 = vadd.xlane.f32.xlu0 %v742
      %v774 = vpop.xlane.xlu0 %773
      %775 = vadd.xlane.f32.xlu0 %v744
      %v776 = vpop.xlane.xlu0 %775
      %777 = vadd.xlane.f32.xlu0 %v746
      %v778 = vpop.xlane.xlu0 %777
      %779 = vadd.xlane.f32.xlu0 %v748
      %v780 = vpop.xlane.xlu0 %779
      %781 = vadd.xlane.f32.xlu0 %v750
      %v782 = vpop.xlane.xlu0 %781
      %783 = vadd.xlane.f32.xlu0 %v752
      %v784 = vpop.xlane.xlu0 %783
      %785 = vadd.xlane.f32.xlu0 %v754
      %v786 = vpop.xlane.xlu0 %785
      %787 = vadd.xlane.f32.xlu0 %v756
      %v788 = vpop.xlane.xlu0 %787
      %789 = vadd.xlane.f32.xlu0 %v758
      %v790 = vpop.xlane.xlu0 %789
      %791 = vadd.xlane.f32.xlu0 %v760
      %v792 = vpop.xlane.xlu0 %791
      %793 = vadd.xlane.f32.xlu0 %v762
      %v794 = vpop.xlane.xlu0 %793
      %795 = vadd.xlane.f32.xlu0 %v764
      %v796 = vpop.xlane.xlu0 %795
      %797 = vadd.xlane.f32.xlu0 %v766
      %v798 = vpop.xlane.xlu0 %797
      %v799 = vrcp.pop %v768
      %v800 = vrcp.pop %v770
      %v801 = vrcp.pop %v772
      %v802 = vrcp.pop %v774
      %v803 = vrcp.pop %v776
      %v804 = vrcp.pop %v778
      %v805 = vrcp.pop %v780
      %v806 = vrcp.pop %v782
      %v807 = vrcp.pop %v784
      %v808 = vrcp.pop %v786
      %v809 = vrcp.pop %v788
      %v810 = vrcp.pop %v790
      %v811 = vrcp.pop %v792
      %v812 = vrcp.pop %v794
      %v813 = vrcp.pop %v796
      %v814 = vrcp.pop %v798
      %v815 = vmul.f32 %v736, %v799
      %v816 = vmul.f32 %v738, %v800
      %v817 = vmul.f32 %v740, %v801
      %v818 = vmul.f32 %v742, %v802
      %v819 = vmul.f32 %v744, %v803
      %v820 = vmul.f32 %v746, %v804
      %v821 = vmul.f32 %v748, %v805
      %v822 = vmul.f32 %v750, %v806
      %v823 = vmul.f32 %v752, %v807
      %v824 = vmul.f32 %v754, %v808
      %v825 = vmul.f32 %v756, %v809
      %v826 = vmul.f32 %v758, %v810
      %v827 = vmul.f32 %v760, %v811
      %v828 = vmul.f32 %v762, %v812
      %v829 = vmul.f32 %v764, %v813
      %v830 = vmul.f32 %v766, %v814
      %v831 = vpack.c.bf16 %v815, %v815
      %v832 = vpack.c.bf16 %v816, %v816
      %v833 = vpack.c.bf16 %v817, %v817
      %v834 = vpack.c.bf16 %v818, %v818
      %v835 = vpack.c.bf16 %v819, %v819
      %v836 = vpack.c.bf16 %v820, %v820
      %v837 = vpack.c.bf16 %v821, %v821
      %v838 = vpack.c.bf16 %v822, %v822
      %v839 = vpack.c.bf16 %v823, %v823
      %v840 = vpack.c.bf16 %v824, %v824
      %v841 = vpack.c.bf16 %v825, %v825
      %v842 = vpack.c.bf16 %v826, %v826
      %v843 = vpack.c.bf16 %v827, %v827
      %v844 = vpack.c.bf16 %v828, %v828
      %v845 = vpack.c.bf16 %v829, %v829
      %v846 = vpack.c.bf16 %v830, %v830
      %v863 = vunpack.c.l.b16 %v831
      %v864 = vunpack.c.l.b16 %v832
      %v865 = vunpack.c.l.b16 %v833
      %v866 = vunpack.c.l.b16 %v834
      %v867 = vunpack.c.l.b16 %v835
      %v868 = vunpack.c.l.b16 %v836
      %v869 = vunpack.c.l.b16 %v837
      %v870 = vunpack.c.l.b16 %v838
      %v871 = vunpack.c.l.b16 %v839
      %v872 = vunpack.c.l.b16 %v840
      %v873 = vunpack.c.l.b16 %v841
      %v874 = vunpack.c.l.b16 %v842
      %v875 = vunpack.c.l.b16 %v843
      %v876 = vunpack.c.l.b16 %v844
      %v877 = vunpack.c.l.b16 %v845
      %v878 = vunpack.c.l.b16 %v846
      %v879 = vpack.c.b16 %v864, %v863
      %v880 = vpack.c.b16 %v866, %v865
      %v881 = vpack.c.b16 %v868, %v867
      %v882 = vpack.c.b16 %v870, %v869
      %v883 = vpack.c.b16 %v872, %v871
      %v884 = vpack.c.b16 %v874, %v873
      %v885 = vpack.c.b16 %v876, %v875
      %v886 = vpack.c.b16 %v878, %v877
      %v911 = vunpack.c.l.b16 %v507
      %v912 = vunpack.c.l.b16 %v508
      %v913 = vunpack.c.l.b16 %v509
      %v914 = vunpack.c.l.b16 %v510
      %v915 = vunpack.c.l.b16 %v511
      %v916 = vunpack.c.l.b16 %v512
      %v917 = vunpack.c.l.b16 %v513
      %v918 = vunpack.c.l.b16 %v514
      %v919 = vunpack.c.l.b16 %v515
      %v920 = vunpack.c.l.b16 %v516
      %v921 = vunpack.c.l.b16 %v517
      %v922 = vunpack.c.l.b16 %v518
      %v923 = vunpack.c.l.b16 %v519
      %v924 = vunpack.c.l.b16 %v520
      %v925 = vunpack.c.l.b16 %v521
      %v926 = vunpack.c.l.b16 %v522
      %v927 = vpack.c.b16 %v912, %v911
      %v928 = vpack.c.b16 %v914, %v913
      %v929 = vpack.c.b16 %v916, %v915
      %v930 = vpack.c.b16 %v918, %v917
      %v931 = vpack.c.b16 %v920, %v919
      %v932 = vpack.c.b16 %v922, %v921
      %v933 = vpack.c.b16 %v924, %v923
      %v934 = vpack.c.b16 %v926, %v925
      %943 = vmatpush.bf16.msra.mxu0 %v934
      %944 = vmatpush.bf16.msra.mxu0 %v933
      %945 = vmatpush.bf16.msra.mxu0 %v932
      %946 = vmatpush.bf16.msra.mxu0 %v931
      %947 = vmatpush.bf16.msra.mxu0 %v930
      %948 = vmatpush.bf16.msra.mxu0 %v929
      %949 = vmatpush.bf16.msra.mxu0 %v928
      %950 = vmatpush.bf16.msra.mxu0 %v927
      %951 = vmatmul.bf16.gmra.mxu0 %v879
      %v952 = vpop.f32.mrf.mxu0
      %v953 = vadd.f32 0.0, %v952
      %v954 = vpop.f32.mrf.mxu0
      %v955 = vadd.f32 0.0, %v954
      %956 = vmatmul.bf16.gmra.mxu0 %v880
      %v957 = vpop.f32.mrf.mxu0
      %v958 = vadd.f32 0.0, %v957
      %v959 = vpop.f32.mrf.mxu0
      %v960 = vadd.f32 0.0, %v959
      %961 = vmatmul.bf16.gmra.mxu0 %v881
      %v962 = vpop.f32.mrf.mxu0
      %v963 = vadd.f32 0.0, %v962
      %v964 = vpop.f32.mrf.mxu0
      %v965 = vadd.f32 0.0, %v964
      %966 = vmatmul.bf16.gmra.mxu0 %v882
      %v967 = vpop.f32.mrf.mxu0
      %v968 = vadd.f32 0.0, %v967
      %v969 = vpop.f32.mrf.mxu0
      %v970 = vadd.f32 0.0, %v969
      %971 = vmatmul.bf16.gmra.mxu0 %v883
      %v972 = vpop.f32.mrf.mxu0
      %v973 = vadd.f32 0.0, %v972
      %v974 = vpop.f32.mrf.mxu0
      %v975 = vadd.f32 0.0, %v974
      %976 = vmatmul.bf16.gmra.mxu0 %v884
      %v977 = vpop.f32.mrf.mxu0
      %v978 = vadd.f32 0.0, %v977
      %v979 = vpop.f32.mrf.mxu0
      %v980 = vadd.f32 0.0, %v979
      %981 = vmatmul.bf16.gmra.mxu0 %v885
      %v982 = vpop.f32.mrf.mxu0
      %v983 = vadd.f32 0.0, %v982
      %v984 = vpop.f32.mrf.mxu0
      %v985 = vadd.f32 0.0, %v984
      %986 = vmatmul.bf16.gmra.mxu0 %v886
      %v987 = vpop.f32.mrf.mxu0
      %v988 = vadd.f32 0.0, %v987
      %v989 = vpop.f32.mrf.mxu0
      %v990 = vadd.f32 0.0, %v989
      %991 = vdwg.mxu0
      %v992 = vpack.c.bf16 %v953, %v953
      %v993 = vpack.c.bf16 %v955, %v955
      %v994 = vpack.c.bf16 %v958, %v958
      %v995 = vpack.c.bf16 %v960, %v960
      %v996 = vpack.c.bf16 %v963, %v963
      %v997 = vpack.c.bf16 %v965, %v965
      %v998 = vpack.c.bf16 %v968, %v968
      %v999 = vpack.c.bf16 %v970, %v970
      %v1000 = vpack.c.bf16 %v973, %v973
      %v1001 = vpack.c.bf16 %v975, %v975
      %v1002 = vpack.c.bf16 %v978, %v978
      %v1003 = vpack.c.bf16 %v980, %v980
      %v1004 = vpack.c.bf16 %v983, %v983
      %v1005 = vpack.c.bf16 %v985, %v985
      %v1006 = vpack.c.bf16 %v988, %v988
      %v1007 = vpack.c.bf16 %v990, %v990
      %1008 = vst [vmem:[%s178] sm:$0xf] %v992
      %1009 = vst [vmem:[%s178 + $0x4] sm:$0xf] %v993
      %1010 = vst [vmem:[%s178 + $0x8] sm:$0xf] %v994
      %1011 = vst [vmem:[%s178 + $0xc] sm:$0xf] %v995
      %1012 = vst [vmem:[%s178 + $0x10] sm:$0xf] %v996
      %1013 = vst [vmem:[%s178 + $0x14] sm:$0xf] %v997
      %1014 = vst [vmem:[%s178 + $0x18] sm:$0xf] %v998
      %1015 = vst [vmem:[%s178 + $0x1c] sm:$0xf] %v999
      %1016 = vst [vmem:[%s178 + $0x20] sm:$0xf] %v1000
      %1017 = vst [vmem:[%s178 + $0x24] sm:$0xf] %v1001
      %1018 = vst [vmem:[%s178 + $0x28] sm:$0xf] %v1002
      %1019 = vst [vmem:[%s178 + $0x2c] sm:$0xf] %v1003
      %1020 = vst [vmem:[%s178 + $0x30] sm:$0xf] %v1004
      %1021 = vst [vmem:[%s178 + $0x34] sm:$0xf] %v1005
      %1022 = vst [vmem:[%s178 + $0x38] sm:$0xf] %v1006
      %1023 = vst [vmem:[%s178 + $0x3c] sm:$0xf] %v1007
      %1024 = vst [vmem:[%s183] sm:$0xf] %v831
      %1025 = vst [vmem:[%s183 + $0x4] sm:$0xf] %v832
      %1026 = vst [vmem:[%s183 + $0x8] sm:$0xf] %v833
      %1027 = vst [vmem:[%s183 + $0xc] sm:$0xf] %v834
      %1028 = vst [vmem:[%s183 + $0x10] sm:$0xf] %v835
      %1029 = vst [vmem:[%s183 + $0x14] sm:$0xf] %v836
      %1030 = vst [vmem:[%s183 + $0x18] sm:$0xf] %v837
      %1031 = vst [vmem:[%s183 + $0x1c] sm:$0xf] %v838
      %1032 = vst [vmem:[%s183 + $0x20] sm:$0xf] %v839
      %1033 = vst [vmem:[%s183 + $0x24] sm:$0xf] %v840
      %1034 = vst [vmem:[%s183 + $0x28] sm:$0xf] %v841
      %1035 = vst [vmem:[%s183 + $0x2c] sm:$0xf] %v842
      %1036 = vst [vmem:[%s183 + $0x30] sm:$0xf] %v843
      %1037 = vst [vmem:[%s183 + $0x34] sm:$0xf] %v844
      %1038 = vst [vmem:[%s183 + $0x38] sm:$0xf] %v845
      %1039 = vst [vmem:[%s183 + $0x3c] sm:$0xf] %v846
      %p1040 = scmp.lt.s32.totalorder %s15, 1
      %s1041 = scalar_select %p1040, %s15, 1
      %s1042 = smul.addr %s1041, 16
      %s1043 = smul.addr %s1042, 4
      %s1044 = scalar_lea.vmem %s2, %s1043
      %p1045 = scmp.lt.s32.totalorder %s15, 1
      %s1046 = scalar_select %p1045, %s15, 1
      %s1047 = smul.addr %s1046, 16
      %s1048 = smul.addr %s1047, 4
      %s1049 = scalar_lea.vmem %s3, %s1048
      // Predicated region
      $region29: #{forward.1} parent=27 // pred_check
        %p1050 = pneg %p80
      $region30: #{forward.1} parent=27 // pred_check_branch
        %1052 = sbr.rel (%p1050) target = $region32
      $region31: #{forward.1} parent=27 // pred_region
        _
      $region32: #{forward.1} parent=27 // pred_fallthru
        _
      // Predicated region
      $region33: #{forward.1} parent=27 // pred_check
        %p1053 = pneg %p106
      $region34: #{forward.1} parent=27 // pred_check_branch
        %1055 = sbr.rel (%p1053) target = $region36
      $region35: #{forward.1} parent=27 // pred_region
        _
      $region36: #{forward.1} parent=27 // pred_fallthru
        _
    $region28: #{forward.1} parent=5 // pred_fallthru
      _
    %p1056 = scmp.le.s32.totalorder 2, %s10
    // Predicated region
    $region37: #{forward.1} parent=5 // pred_check
      %p1057 = pneg %p1056
    $region38: #{forward.1} parent=5 // pred_check_branch
      %1059 = sbr.rel (%p1057) target = $region40
    $region39: #{forward.1} parent=5 // pred_region
      %s1060 = ssub.s32 %s10, 2
      // Predicated region
      $region41: #{forward.1} parent=39 // pred_check
        %p1061 = pneg %p86
      $region42: #{forward.1} parent=39 // pred_check_branch
        %1063 = sbr.rel (%p1061) target = $region44
      $region43: #{forward.1} parent=39 // pred_region
        %p1064 = scmp.lt.s32.totalorder %s16, 1
        %s1065 = scalar_select %p1064, %s16, 1
        %s1066 = smul.addr %s1065, 16
        %s1067 = smul.addr %s1066, 4
        %s1068 = scalar_lea.vmem %s2, %s1067
      $region44: #{forward.1} parent=39 // pred_fallthru
        _
      // Predicated region
      $region45: #{forward.1} parent=39 // pred_check
        %p1069 = pneg %p112
      $region46: #{forward.1} parent=39 // pred_check_branch
        %1071 = sbr.rel (%p1069) target = $region48
      $region47: #{forward.1} parent=39 // pred_region
        %p1072 = scmp.lt.s32.totalorder %s16, 1
        %s1073 = scalar_select %p1072, %s16, 1
        %s1074 = smul.addr %s1073, 16
        %s1075 = smul.addr %s1074, 4
        %s1076 = scalar_lea.vmem %s3, %s1075
      $region48: #{forward.1} parent=39 // pred_fallthru
        _
    $region40: #{forward.1} parent=5 // pred_fallthru
      _
  $region6: #{forward.1} parent=0 // loop_footer
    %s14 = sadd.s32 1, %s10
  $region7: #{forward.1} parent=0 // loop_footer_branch
    %9 = sbr.rel target = $region3
  $region8: #{forward.1} parent=0 // loop_exit
    _

</llo_original>
